<compile_context>
chip_gen: v7x
topology: tpu7x:2x2x1
jax: 0.10.0
libtpu: 0.0.40
codegen_flags: <defaults>
</compile_context>

<pallas_src>
import functools

import jax
import jax.numpy as jnp
from jax import lax
from jax.experimental import pallas as pl
from jax.experimental.pallas import tpu as pltpu


def _round_up(n, m):
    return ((n + m - 1) // m) * m


# ----------------------------------------------------------------------------
# Kernel body
# ----------------------------------------------------------------------------
def _scaled_linear_body(x_ref, w_ref, b_ref, s_ref, o_ref, acc_ref, *,
                        scale, tk, w_resident):
    k = pl.program_id(1)

    @pl.when(k == 0)
    def _init():
        acc_ref[...] = jnp.zeros_like(acc_ref)

    if w_resident:
        # Whole W lives in VMEM; take the current contraction slice (offset is
        # always a multiple of 128 because tk is).
        off = pl.multiple_of(k * tk, 128)
        w_blk = w_ref[:, pl.ds(off, tk)]          # (L, tk)
    else:
        w_blk = w_ref[...]                        # (L, tk) streamed block

    # (L, tk) . (tm, tk) contracting tk == (x @ W^T)^T: the tiny L sits on
    # sublanes, the batch tile fills the lanes / MXU output columns.
    acc_ref[...] += lax.dot_general(
        w_blk, x_ref[...],
        dimension_numbers=(((1,), (1,)), ((), ())),
        preferred_element_type=jnp.float32)

    @pl.when(k == pl.num_programs(1) - 1)
    def _finalize():
        y = acc_ref[...] + b_ref[...].astype(jnp.float32)    # (L, tm) + (L, 1)
        if scale:
            y = y * jnp.abs(s_ref[...]).astype(jnp.float32)
        o_ref[...] = y.astype(o_ref.dtype)


def _kernel_with_scale(x_ref, w_ref, b_ref, s_ref, o_ref, acc_ref, *,
                       tk, w_resident):
    _scaled_linear_body(x_ref, w_ref, b_ref, s_ref, o_ref, acc_ref,
                        scale=True, tk=tk, w_resident=w_resident)


def _kernel_no_scale(x_ref, w_ref, b_ref, o_ref, acc_ref, *, tk, w_resident):
    _scaled_linear_body(x_ref, w_ref, b_ref, None, o_ref, acc_ref,
                        scale=False, tk=tk, w_resident=w_resident)


# ----------------------------------------------------------------------------
# Tile selection
# ----------------------------------------------------------------------------
_VMEM_BUDGET = 20 << 20       # working-set target; headroom on v5e/v6e/v7x
_W_RESIDENT_LIMIT = 4 << 20   # keep the full W in VMEM when it is this small


def _pick_tiles(B, D, L, itemsize):
    # Contraction tile tk (lane axis of x and W): multiple of 128.
    d128 = _round_up(D, 128)
    if d128 <= 2048:
        tk = d128                                 # single K step (K collapses)
    else:
        tk = 128
        for cand in (2048, 1024, 512, 256, 128):  # largest with small pad waste
            if _round_up(D, cand) - D <= max(D // 8, 128):
                tk = cand
                break
    Dp = _round_up(D, tk)

    # Batch tile tm (lane axis of the (L, tm) output block): must be a multiple
    # of 128, or equal the whole (padded) batch axis.
    b8 = _round_up(B, 8)
    if b8 <= 128:
        tm = b8                                   # one batch tile (full-dim block)
    else:
        tm = 128
        for cand in (512, 256, 128):
            if _round_up(B, cand) - B <= max(B // 8, 128):
                tm = cand
                break
    Bp = _round_up(B, tm)

    # VMEM budget: double-buffered x, resident (or streamed) W, output, acc.
    def fits(tm_, tk_, dp_):
        w_full = 2 * L * dp_ * itemsize
        w_buf = w_full if w_full <= _W_RESIDENT_LIMIT else 2 * L * tk_ * itemsize
        x_buf = 2 * tm_ * tk_ * itemsize
        o_buf = 2 * L * tm_ * itemsize
        acc = L * tm_ * 4
        return x_buf + w_buf + o_buf + acc <= _VMEM_BUDGET

    while not fits(tm, tk, Dp) and tk > 128:
        tk //= 2
        Dp = _round_up(D, tk)
    while not fits(tm, tk, Dp) and tm > 128:
        tm //= 2
        Bp = _round_up(B, tm)

    # Give v7x's two TensorCores at least two batch tiles to share.
    if Bp // tm == 1 and tm >= 256:
        tm //= 2
        Bp = _round_up(B, tm)

    return tm, tk, Bp, Dp


# ----------------------------------------------------------------------------
# Wrapper
# ----------------------------------------------------------------------------
def scaled_functions_forward(x, w, b, scales_param, scale=False):
    """Pallas implementation of ScaledFunctions.forward with a Linear base_model.

    x:            (B, D)  input batch
    w:            (L, D)  Linear weight, PyTorch (out_features, in_features)
    b:            (L,)    Linear bias
    scales_param: (L,)    nn.Parameter; forward uses |scales_param|
    scale:        static bool matching the PyTorch `scale` kwarg
    """
    B, D = x.shape
    L = w.shape[0]
    itemsize = jnp.dtype(x.dtype).itemsize

    tm, tk, Bp, Dp = _pick_tiles(B, D, L, itemsize)
    grid = (Bp // tm, Dp // tk)
    w_resident = 2 * L * Dp * itemsize <= _W_RESIDENT_LIMIT

    # Zero-pad to the tile grid (zeros contribute nothing to the contraction;
    # padded batch rows are sliced away below).
    x_p = x if (Bp == B and Dp == D) else jnp.pad(x, ((0, Bp - B), (0, Dp - D)))
    w_p = w if Dp == D else jnp.pad(w, ((0, 0), (0, Dp - D)))
    b2 = b.reshape(L, 1)

    if w_resident:
        w_spec = pl.BlockSpec((L, Dp), lambda i, k: (0, 0))   # DMA'd once, resident
    else:
        # TODO(synk): very large L*D falls back to streaming W per K block; a
        # production kernel at that scale would also tile the L axis.
        w_spec = pl.BlockSpec((L, tk), lambda i, k: (0, k))

    in_specs = [
        pl.BlockSpec((tm, tk), lambda i, k: (i, k)),          # x tile
        w_spec,                                               # W
        pl.BlockSpec((L, 1), lambda i, k: (0, 0)),            # bias (broadcast)
    ]
    args = [x_p, w_p, b2]
    if scale:
        in_specs.append(pl.BlockSpec((L, 1), lambda i, k: (0, 0)))   # |scales|
        args.append(scales_param.reshape(L, 1))
        kernel = functools.partial(_kernel_with_scale, tk=tk, w_resident=w_resident)
    else:
        kernel = functools.partial(_kernel_no_scale, tk=tk, w_resident=w_resident)

    out_lb = pl.pallas_call(
        kernel,
        out_shape=jax.ShapeDtypeStruct((L, Bp), x.dtype),     # (L, B): lane-dense
        grid_spec=pltpu.PrefetchScalarGridSpec(
            num_scalar_prefetch=0,
            grid=grid,
            in_specs=in_specs,
            out_specs=pl.BlockSpec((L, tm), lambda i, k: (0, i)),
            scratch_shapes=[pltpu.VMEM((L, tm), jnp.float32)],
        ),
        compiler_params=pltpu.CompilerParams(
            dimension_semantics=("parallel", "arbitrary"),
            vmem_limit_bytes=32 << 20),
        cost_estimate=pl.CostEstimate(
            flops=2 * B * D * L,
            transcendentals=0,
            bytes_accessed=itemsize * (B * D + L * D + B * L)),
    )(*args)

    # Cheap layout plumbing on the tiny (L, B) result back to PyTorch's (B, L).
    return out_lb.T[:B]


# ----------------------------------------------------------------------------
# Reference + demo
# ----------------------------------------------------------------------------
def _reference(x, w, b, scales_param, scale=False):
    y = jnp.dot(x, w.T, precision=lax.Precision.HIGHEST) + b
    if scale:
        y = y * jnp.abs(scales_param)
    return y


if __name__ == "__main__":
    key = jax.random.PRNGKey(0)
    k_x, k_w, k_b, k_s = jax.random.split(key, 4)

    # (B, D, L): tiny (module-demo scale), tiled (exercises the batch grid and
    # the megacore split), and non-aligned (exercises zero-padding).
    cases = ((8, 32, 8), (512, 384, 8), (100, 200, 8))

    ok = True
    for (B, D, L) in cases:
        x = jax.random.normal(k_x, (B, D), dtype=jnp.float32)
        w = jax.random.normal(k_w, (L, D), dtype=jnp.float32) * 0.1
        b = jax.random.normal(k_b, (L,), dtype=jnp.float32) * 0.1
        # init_scales with some negative entries, to exercise the abs()
        scales_param = jax.random.normal(k_s, (L,), dtype=jnp.float32)

        out_scaled = jax.block_until_ready(
            scaled_functions_forward(x, w, b, scales_param, scale=True))
        out_plain = jax.block_until_ready(
            scaled_functions_forward(x, w, b, scales_param, scale=False))

        ref_scaled = _reference(x, w, b, scales_param, scale=True)
        ref_plain = _reference(x, w, b, scales_param, scale=False)

        ok &= out_scaled.shape == (B, L) and out_plain.shape == (B, L)
        ok &= bool(jnp.allclose(out_scaled, ref_scaled, atol=1e-3, rtol=1e-3))
        ok &= bool(jnp.allclose(out_plain, ref_plain, atol=1e-3, rtol=1e-3))

    assert ok
    print("KERNEL_OK")
</pallas_src>

<mosaic_0001>
module attributes {stable_mosaic.version = 11 : i64} {
  func.func @_kernel_with_scale(%arg0: i32, %arg1: i32, %arg2: memref<8x128xf32, #tpu.memory_space<vmem>>, %arg3: memref<8x128xf32, #tpu.memory_space<vmem>>, %arg4: memref<8x1xf32, #tpu.memory_space<vmem>>, %arg5: memref<8x1xf32, #tpu.memory_space<vmem>>, %arg6: memref<8x8xf32, #tpu.memory_space<vmem>>, %arg7: memref<8x8xf32, #tpu.memory_space<vmem>>) attributes {dimension_semantics = [#tpu.dimension_semantics<parallel>, #tpu.dimension_semantics<arbitrary>], iteration_bounds = array<i64: 1, 1>, scalar_prefetch = 0 : i64, scratch_operands = 1 : i64, tpu.core_type = #tpu.core_type<tc>, window_params = [{transform_indices = @transform_0, window_bounds = array<i64: 8, 128>}, {pipeline_mode = #tpu.pipeline_mode<synchronous>, transform_indices = @transform_1, window_bounds = array<i64: 8, 128>}, {pipeline_mode = #tpu.pipeline_mode<synchronous>, transform_indices = @transform_2, window_bounds = array<i64: 8, 1>}, {pipeline_mode = #tpu.pipeline_mode<synchronous>, transform_indices = @transform_3, window_bounds = array<i64: 8, 1>}, {transform_indices = @transform_4, window_bounds = array<i64: 8, 8>}]} {
    %c0_i32 = arith.constant 0 : i32
    %0 = arith.cmpi eq, %arg1, %c0_i32 : i32
    %1 = arith.extui %0 : i1 to i32
    %c0_i32_0 = arith.constant 0 : i32
    %2 = arith.cmpi ne, %1, %c0_i32_0 : i32
    scf.if %2 {
      %cst_9 = arith.constant 0.000000e+00 : f32
      %15 = vector.broadcast %cst_9 : f32 to vector<8x8xf32>
      %c0_10 = arith.constant 0 : index
      %c0_11 = arith.constant 0 : index
      %16 = vector.load %arg7[%c0_10, %c0_11] : memref<8x8xf32, #tpu.memory_space<vmem>>, vector<8x8xf32>
      tpu.vector_store %arg7[%c0_10, %c0_11], %15 {strides = array<i32>} : memref<8x8xf32, #tpu.memory_space<vmem>>, vector<8x8xf32>,
    } else {
    }
    %c128_i32 = arith.constant 128 : i32
    %3 = arith.muli %arg1, %c128_i32 : i32
    %4 = tpu.assume_multiple %3, 128 : i32
    %c0 = arith.constant 0 : index
    %5 = arith.index_cast %4 : i32 to index
    %6 = vector.load %arg3[%c0, %5] : memref<8x128xf32, #tpu.memory_space<vmem>>, vector<8x128xf32>
    %c0_1 = arith.constant 0 : index
    %c0_2 = arith.constant 0 : index
    %7 = vector.load %arg7[%c0_1, %c0_2] : memref<8x8xf32, #tpu.memory_space<vmem>>, vector<8x8xf32>
    %c0_3 = arith.constant 0 : index
    %c0_4 = arith.constant 0 : index
    %8 = vector.load %arg2[%c0_3, %c0_4] : memref<8x128xf32, #tpu.memory_space<vmem>>, vector<8x128xf32>
    %cst = arith.constant dense<0.000000e+00> : vector<8x8xf32>
    %9 = tpu.matmul %6, %8, %cst {dimension_numbers = #tpu.dot_dimension_numbers<[1], [1], [0], [0], [0, 0, 1, 0], [], []>} : vector<8x128xf32>, vector<8x128xf32>, vector<8x8xf32> -> vector<8x8xf32>
    %10 = arith.addf %7, %9 : vector<8x8xf32>
    %c0_5 = arith.constant 0 : index
    %c0_6 = arith.constant 0 : index
    %11 = vector.load %arg7[%c0_5, %c0_6] : memref<8x8xf32, #tpu.memory_space<vmem>>, vector<8x8xf32>
    tpu.vector_store %arg7[%c0_5, %c0_6], %10 {strides = array<i32>} : memref<8x8xf32, #tpu.memory_space<vmem>>, vector<8x8xf32>,
    %c0_i32_7 = arith.constant 0 : i32
    %12 = arith.cmpi eq, %arg1, %c0_i32_7 : i32
    %13 = arith.extui %12 : i1 to i32
    %c0_i32_8 = arith.constant 0 : i32
    %14 = arith.cmpi ne, %13, %c0_i32_8 : i32
    scf.if %14 {
      %c0_9 = arith.constant 0 : index
      %c0_10 = arith.constant 0 : index
      %15 = vector.load %arg7[%c0_9, %c0_10] : memref<8x8xf32, #tpu.memory_space<vmem>>, vector<8x8xf32>
      %c0_11 = arith.constant 0 : index
      %c0_12 = arith.constant 0 : index
      %16 = vector.load %arg4[%c0_11, %c0_12] : memref<8x1xf32, #tpu.memory_space<vmem>>, vector<8x1xf32>
      %17 = vector.broadcast %16 : vector<8x1xf32> to vector<8x8xf32>
      %18 = arith.addf %15, %17 : vector<8x8xf32>
      %c0_13 = arith.constant 0 : index
      %c0_14 = arith.constant 0 : index
      %19 = vector.load %arg5[%c0_13, %c0_14] : memref<8x1xf32, #tpu.memory_space<vmem>>, vector<8x1xf32>
      %20 = math.absf %19 : vector<8x1xf32>
      %21 = vector.broadcast %20 : vector<8x1xf32> to vector<8x8xf32>
      %22 = arith.mulf %18, %21 : vector<8x8xf32>
      %c0_15 = arith.constant 0 : index
      %c0_16 = arith.constant 0 : index
      %23 = vector.load %arg6[%c0_15, %c0_16] : memref<8x8xf32, #tpu.memory_space<vmem>>, vector<8x8xf32>
      tpu.vector_store %arg6[%c0_15, %c0_16], %22 {strides = array<i32>} : memref<8x8xf32, #tpu.memory_space<vmem>>, vector<8x8xf32>,
    } else {
    }
    return
  }
  func.func @transform_0(%arg0: i32, %arg1: i32) -> (i32, i32) {
    %c0_i32 = arith.constant 0 : i32
    return %arg0, %arg1 : i32, i32
  }
  func.func @transform_1(%arg0: i32, %arg1: i32) -> (i32, i32) {
    %c0_i32 = arith.constant 0 : i32
    %c0_i32_0 = arith.constant 0 : i32
    %c0_i32_1 = arith.constant 0 : i32
    return %c0_i32, %c0_i32_0 : i32, i32
  }
  func.func @transform_2(%arg0: i32, %arg1: i32) -> (i32, i32) {
    %c0_i32 = arith.constant 0 : i32
    %c0_i32_0 = arith.constant 0 : i32
    %c0_i32_1 = arith.constant 0 : i32
    return %c0_i32, %c0_i32_0 : i32, i32
  }
  func.func @transform_3(%arg0: i32, %arg1: i32) -> (i32, i32) {
    %c0_i32 = arith.constant 0 : i32
    %c0_i32_0 = arith.constant 0 : i32
    %c0_i32_1 = arith.constant 0 : i32
    return %c0_i32, %c0_i32_0 : i32, i32
  }
  func.func @transform_4(%arg0: i32, %arg1: i32) -> (i32, i32) {
    %c0_i32 = arith.constant 0 : i32
    %c0_i32_0 = arith.constant 0 : i32
    return %c0_i32, %arg0 : i32, i32
  }
}

</mosaic_0001>

<llo_original>
// kernel: tpu_custom_call.1
$region0: #{tpu_custom_call.1}
  #allocation0 [shape = 'u32[]', space=smem, size = 0x4, offset = 0x4, fixed_abs, tag = 'smem constant byte address 0x4 - core index']
  #allocation1 [shape = 'u32[144,128]{1,0:T(1,128)}', space=vmem, size = 0x12000, scoped, tag = 'internal scratch']
  #allocation2 [shape = 'f32[8,8]{1,0:T(8,128)}', space=vmem, size = 0x1000, scoped, tag = 'scratch operand']
  %s0 = inlined_call_operand.vmem [shape: f32[8,128], index: 0, kind: input, shape index: {}]
  %s1 = inlined_call_operand.vmem [shape: f32[8,128], index: 1, kind: input, shape index: {}]
  %s2 = inlined_call_operand.vmem [shape: f32[8,1], index: 2, kind: input, shape index: {}]
  %s3 = inlined_call_operand.vmem [shape: f32[8,1], index: 3, kind: input, shape index: {}]
  %s4 = inlined_call_operand.hbm [shape: f32[8,8], index: 4, kind: output, shape index: {}]
  %s5 = sld [smem:[#allocation0]]
  $region34: #{tpu_custom_call.1} parent=0
    _
  %s7 = ssub.s32 1, %s5
  %s8 = scalar_select 0, %s7, %s5
  $region1: #{tpu_custom_call.1} parent=0
    #allocation3 [shape = 'u8[4096]{0}', space=vmem, size = 0x1000, scoped, tag = 'output window, operand 0, single buffered']
    #allocation4 [shape = 's32[1]{0}', space=sflag, size = 0x4, scoped, tag = 'scoped memory for tpu_custom_call.1']
    %9 = vsyncpa [#allocation4], 0
    // Predicated region
    $region2: #{tpu_custom_call.1} parent=1 // pred_check
      _
    $region3: #{tpu_custom_call.1} parent=1 // pred_check_branch
      %11 = sbr.rel (0) target = $region5
    $region4: #{tpu_custom_call.1} parent=1 // pred_region
      _
    $region5: #{tpu_custom_call.1} parent=1 // pred_fallthru
      _
    // Predicated region
    $region6: #{tpu_custom_call.1} parent=1 // pred_check
      _
    $region7: #{tpu_custom_call.1} parent=1 // pred_check_branch
      %13 = sbr.rel (0) target = $region9
    $region8: #{tpu_custom_call.1} parent=1 // pred_region
      _
    $region9: #{tpu_custom_call.1} parent=1 // pred_fallthru
      _
    // Predicated region
    $region10: #{tpu_custom_call.1} parent=1 // pred_check
      _
    $region11: #{tpu_custom_call.1} parent=1 // pred_check_branch
      %15 = sbr.rel (0) target = $region13
    $region12: #{tpu_custom_call.1} parent=1 // pred_region
      _
    $region13: #{tpu_custom_call.1} parent=1 // pred_fallthru
      _
    // Predicated region
    $region14: #{tpu_custom_call.1} parent=1 // pred_check
      _
    $region15: #{tpu_custom_call.1} parent=1 // pred_check_branch
      %17 = sbr.rel (0) target = $region17
    $region16: #{tpu_custom_call.1} parent=1 // pred_region
      _
    $region17: #{tpu_custom_call.1} parent=1 // pred_fallthru
      _
    %p18 = scmp.eq.s32.totalorder 0, 0
    // Predicated region
    $region18: #{tpu_custom_call.1} parent=1 // pred_check
      %p19 = pneg %p18
    $region19: #{tpu_custom_call.1} parent=1 // pred_check_branch
      %21 = sbr.rel (%p19) target = $region21
    $region20: #{tpu_custom_call.1} parent=1 // pred_region
      %vm22 = vcmask 64512
      %23 = vst.msk [vmem:[#allocation2] sm:$0xff] %vm22, 0.0
    $region21: #{tpu_custom_call.1} parent=1 // pred_fallthru
      _
    %s24 = smul.u32 0, 128
    %s25 = sshra.s32 %s24, 7
    %s26 = sand.u32 %s24, 127
    %s27 = scalar_lea.vmem %s1, %s25
    %v28 = vld [vmem:[%s27] sm:$0xff]
    %v29 = vld [vmem:[#allocation2] sm:$0xff]
    %v30 = vld [vmem:[%s0] sm:$0xff]
    %31 = vmatprep.subr.mxu0 0.0
    %32 = vmatpush1.xpose.msra.mxu0 %v30
    %33 = vmatprep.subr.mxu0 0.0
    %34 = vmatpush1.xpose.msra.mxu0 0.0
    %35 = vmatprep.subr.mxu0 0.0
    %36 = vmatpush1.xpose.msra.mxu0 0.0
    %37 = vmatprep.subr.mxu0 0.0
    %38 = vmatpush1.xpose.msra.mxu0 0.0
    %39 = vmatprep.subr.mxu0 0.0
    %40 = vmatpush1.xpose.msra.mxu0 0.0
    %41 = vmatprep.subr.mxu0 0.0
    %42 = vmatpush1.xpose.msra.mxu0 0.0
    %43 = vmatprep.subr.mxu0 0.0
    %44 = vmatpush1.xpose.msra.mxu0 0.0
    %45 = vmatprep.subr.mxu0 0.0
    %46 = vmatpush1.xpose.msra.mxu0 0.0
    %47 = vmatprep.subr.mxu0 0.0
    %48 = vmatpush1.xpose.msra.mxu0 0.0
    %49 = vmatprep.subr.mxu0 0.0
    %50 = vmatpush1.xpose.msra.mxu0 0.0
    %51 = vmatprep.subr.mxu0 0.0
    %52 = vmatpush1.xpose.msra.mxu0 0.0
    %53 = vmatprep.subr.mxu0 0.0
    %54 = vmatpush1.xpose.msra.mxu0 0.0
    %55 = vmatprep.subr.mxu0 0.0
    %56 = vmatpush1.xpose.msra.mxu0 0.0
    %57 = vmatprep.subr.mxu0 0.0
    %58 = vmatpush1.xpose.msra.mxu0 0.0
    %59 = vmatprep.subr.mxu0 0.0
    %60 = vmatpush1.xpose.msra.mxu0 0.0
    %61 = vmatprep.subr.mxu0 0.0
    %62 = vmatpush1.xpose.msra.mxu0 0.0
    %63 = vmatprep.subr.mxu0 0.0
    %64 = vmatpush1.xpose.msra.mxu0 0.0
    %65 = vmatprep.subr.mxu0 0.0
    %66 = vmatpush1.xpose.msra.mxu0 0.0
    %67 = vmatprep.subr.mxu0 0.0
    %68 = vmatpush1.xpose.msra.mxu0 0.0
    %69 = vmatprep.subr.mxu0 0.0
    %70 = vmatpush1.xpose.msra.mxu0 0.0
    %71 = vmatprep.subr.mxu0 0.0
    %72 = vmatpush1.xpose.msra.mxu0 0.0
    %73 = vmatprep.subr.mxu0 0.0
    %74 = vmatpush1.xpose.msra.mxu0 0.0
    %75 = vmatprep.subr.mxu0 0.0
    %76 = vmatpush1.xpose.msra.mxu0 0.0
    %77 = vmatprep.subr.mxu0 0.0
    %78 = vmatpush1.xpose.msra.mxu0 0.0
    %79 = vmatprep.subr.mxu0 0.0
    %80 = vmatpush1.xpose.msra.mxu0 0.0
    %81 = vmatprep.subr.mxu0 0.0
    %82 = vmatpush1.xpose.msra.mxu0 0.0
    %83 = vmatprep.subr.mxu0 0.0
    %84 = vmatpush1.xpose.msra.mxu0 0.0
    %85 = vmatprep.subr.mxu0 0.0
    %86 = vmatpush1.xpose.msra.mxu0 0.0
    %87 = vmatprep.subr.mxu0 0.0
    %88 = vmatpush1.xpose.msra.mxu0 0.0
    %89 = vmatprep.subr.mxu0 0.0
    %90 = vmatpush1.xpose.msra.mxu0 0.0
    %91 = vmatprep.subr.mxu0 0.0
    %92 = vmatpush1.xpose.msra.mxu0 0.0
    %93 = vmatprep.subr.mxu0 0.0
    %94 = vmatpush1.xpose.msra.mxu0 0.0
    %95 = vmatprep.mubr.f32.mxu0 0.0
    %96 = vmatmul.mubr.f32.gmra.mrb[0].mxu0 %v28
    %v97 = vpop.f32.mrb[0].mxu0
    %v98 = vadd.f32 0.0, %v97
    %v99 = vpop.f32.mrb[0].mxu0
    %100 = vdwg.mxu0
    %v101 = vadd.f32 %v29, %v98
    %vm102 = vcmask 64512
    %103 = vst.msk [vmem:[#allocation2] sm:$0xff] %vm102, %v101
    // Predicated region
    $region22: #{tpu_custom_call.1} parent=1 // pred_check
      %p104 = pneg %p18
    $region23: #{tpu_custom_call.1} parent=1 // pred_check_branch
      %106 = sbr.rel (%p104) target = $region25
    $region24: #{tpu_custom_call.1} parent=1 // pred_region
      %v107 = vld [vmem:[#allocation2] sm:$0xff]
      %v108 = vld [vmem:[%s2] sm:$0xff]
      %110 = vset.pattern.permute.xlu0 0
      %111 = vperm.xlu0 %110, %v108
      %v112 = vpop.permute.xlu0 %111
      %v114 = vadd.f32 %v107, %v112
      %v115 = vld [vmem:[%s3] sm:$0xff]
      %v116 = vand.u32 2147483647, %v115
      %118 = vset.pattern.permute.xlu0 0
      %119 = vperm.xlu0 %118, %v116
      %v120 = vpop.permute.xlu0 %119
      %v122 = vmul.f32 %v114, %v120
      %123 = vst.msk [vmem:[#allocation3] sm:$0xff] %vm102, %v122
    $region25: #{tpu_custom_call.1} parent=1 // pred_fallthru
      _
    // Predicated region
    $region26: #{tpu_custom_call.1} parent=1 // pred_check
      _
    $region27: #{tpu_custom_call.1} parent=1 // pred_check_branch
      %125 = sbr.rel (0) target = $region29
    $region28: #{tpu_custom_call.1} parent=1 // pred_region
      %s127 = ssub.s32 128, 128
      %128 = vsyncadd [#allocation4], %s127
      %s130 = sshll.u32 [#allocation3], 4
      %s131 = int_to_ptr.vmem [resolvable:$true] %s130
      %133 = dma.vmem_to_hbm [thread:$0]  %s131, 128, %s4, [#allocation4]
    $region29: #{tpu_custom_call.1} parent=1 // pred_fallthru
      _
    // Predicated region
    $region30: #{tpu_custom_call.1} parent=1 // pred_check
      _
    $region31: #{tpu_custom_call.1} parent=1 // pred_check_branch
      %135 = sbr.rel (0) target = $region33
    $region32: #{tpu_custom_call.1} parent=1 // pred_region
      %136 = dma.done [#allocation4], 128
    $region33: #{tpu_custom_call.1} parent=1 // pred_fallthru
      _
    %137 = vsyncpa [#allocation4], 1

</llo_original>
